<compile_context>
chip_gen: v7x
topology: tpu7x:2x2x1
jax: 0.10.0
libtpu: 0.0.40
codegen_flags: <defaults>
</compile_context>

<pallas_src>
import jax
import jax.numpy as jnp
from jax.experimental import pallas as pl
from jax.experimental.pallas import tpu as pltpu


def _round_up(n, m):
    return ((n + m - 1) // m) * m


def _mlp_kernel(x_ref, w1_ref, b1_ref, w2_ref, b2_ref, o_ref):
    # Cast x to the MXU dtype inside the kernel (VPU cast; free in a
    # memory/MXU-bound kernel, and saves a full HBM convert pass in the wrapper).
    x = x_ref[...].astype(w1_ref.dtype)
    # layer1: Linear (bf16 MXU matmul, f32 accumulate) + bias + ReLU in f32
    h = jnp.dot(x, w1_ref[...], preferred_element_type=jnp.float32)
    h = jnp.maximum(h + b1_ref[...], 0.0)            # (tm, H) + (1, H) broadcast
    # layer2: Linear (cast activations back to bf16 for the MXU)
    y = jnp.dot(h.astype(w2_ref.dtype), w2_ref[...],
                preferred_element_type=jnp.float32)
    o_ref[...] = (y + b2_ref[...]).astype(o_ref.dtype)


def prediction_mlp(x, w1, b1, w2, b2, *, block_b=512, use_bf16=True,
                   out_dtype=None):
    """Forward pass of prediction_MLP.

    x:  (B, in_dim) or higher-rank with trailing singleton dims (collapsed)
    w1: (in_dim, hidden_dim)   -- transposed vs. torch's (hidden, in)
    b1: (hidden_dim,)
    w2: (hidden_dim, out_dim)  -- transposed vs. torch's (out, hidden)
    b2: (out_dim,)

    block_b: max batch tile height (512 default; 1024 also fine when B permits).
    out_dtype: output dtype; defaults to x.dtype. Pass jnp.bfloat16 to halve the
        output writeback traffic if the consumer tolerates it.
    """
    # torch does x.squeeze() when dim != 2; collapse only the non-batch dims so
    # a size-1 batch is never squeezed away.
    if x.ndim != 2:
        x = x.reshape(x.shape[0], -1)

    B, in_dim = x.shape
    hidden_dim = w1.shape[1]
    out_dim = w2.shape[1]
    out_dtype = x.dtype if out_dtype is None else out_dtype

    # Batch tile: as large as block_b allows. B is NOT padded to tm — Pallas
    # masks the ragged last tile, so there is no pad / slice HBM pass.
    tm = min(block_b, _round_up(B, 8))
    # v7x megacore: "parallel" shards grid *steps*; ensure >= 2 tiles whenever
    # the batch is big enough so the second TensorCore gets work.
    min_tiles, min_tile = 2, 128
    if B >= min_tiles * min_tile and pl.cdiv(B, tm) < min_tiles:
        tm = _round_up(pl.cdiv(B, min_tiles), 8)
    grid_b = pl.cdiv(B, tm)

    # Weight/bias casts are tiny and amortized across the whole batch (unlike x,
    # which the kernel casts in-place on the VPU).
    mxu_dtype = jnp.bfloat16 if use_bf16 else x.dtype
    w1_c = w1.astype(mxu_dtype)
    w2_c = w2.astype(mxu_dtype)
    b1_2d = b1.reshape(1, hidden_dim).astype(jnp.float32)
    b2_2d = b2.reshape(1, out_dim).astype(jnp.float32)

    flops = 2 * B * (in_dim * hidden_dim + hidden_dim * out_dim)
    bytes_accessed = (
        B * in_dim * x.dtype.itemsize
        + in_dim * hidden_dim * jnp.dtype(mxu_dtype).itemsize
        + hidden_dim * out_dim * jnp.dtype(mxu_dtype).itemsize
        + (hidden_dim + out_dim) * 4
        + B * out_dim * jnp.dtype(out_dtype).itemsize
    )

    out = pl.pallas_call(
        _mlp_kernel,
        out_shape=jax.ShapeDtypeStruct((B, out_dim), out_dtype),
        grid_spec=pltpu.PrefetchScalarGridSpec(
            num_scalar_prefetch=0,
            grid=(grid_b,),
            in_specs=[
                # streamed per batch tile
                pl.BlockSpec((tm, in_dim), lambda i: (i, 0)),
                # weights / biases: constant block index -> stay VMEM-resident
                pl.BlockSpec((in_dim, hidden_dim), lambda i: (0, 0)),
                pl.BlockSpec((1, hidden_dim), lambda i: (0, 0)),
                pl.BlockSpec((hidden_dim, out_dim), lambda i: (0, 0)),
                pl.BlockSpec((1, out_dim), lambda i: (0, 0)),
            ],
            out_specs=pl.BlockSpec((tm, out_dim), lambda i: (i, 0)),
        ),
        compiler_params=pltpu.CompilerParams(
            # batch tiles are independent -> shard across TCs (v7x megacore)
            dimension_semantics=("parallel",),
            # headroom over the 16 MiB v5e scoped default; within physical on all gens
            vmem_limit_bytes=32 * 1024 * 1024,
        ),
        cost_estimate=pl.CostEstimate(
            flops=flops, transcendentals=0, bytes_accessed=bytes_accessed),
    )(x, w1_c, b1_2d, w2_c, b2_2d)

    return out


def _reference(x, w1, b1, w2, b2, *, use_bf16=True):
    """Pure-JAX reference mirroring the kernel's precision (bf16 dots, f32 acc)."""
    if x.ndim != 2:
        x = x.reshape(x.shape[0], -1)
    mxu_dtype = jnp.bfloat16 if use_bf16 else x.dtype
    h = jnp.dot(x.astype(mxu_dtype), w1.astype(mxu_dtype),
                preferred_element_type=jnp.float32)
    h = jnp.maximum(h + b1.astype(jnp.float32), 0.0)
    y = jnp.dot(h.astype(mxu_dtype), w2.astype(mxu_dtype),
                preferred_element_type=jnp.float32)
    return (y + b2.astype(jnp.float32)).astype(x.dtype)


if __name__ == "__main__":
    # Module-default feature sizes (512 -> 256 -> 512).
    B, in_dim, hidden_dim, out_dim = 32, 512, 256, 512

    key = jax.random.PRNGKey(0)
    kx, kw1, kb1, kw2, kb2, kx2 = jax.random.split(key, 6)

    # Deterministic synthetic parameters (already in (in, out) layout).
    x = jax.random.normal(kx, (B, in_dim), dtype=jnp.float32)
    w1 = jax.random.normal(kw1, (in_dim, hidden_dim), dtype=jnp.float32) * 0.05
    b1 = jax.random.normal(kb1, (hidden_dim,), dtype=jnp.float32) * 0.05
    w2 = jax.random.normal(kw2, (hidden_dim, out_dim), dtype=jnp.float32) * 0.05
    b2 = jax.random.normal(kb2, (out_dim,), dtype=jnp.float32) * 0.05

    # Test 1: small batch, single tile.
    out = jax.block_until_ready(prediction_mlp(x, w1, b1, w2, b2))
    ref = _reference(x, w1, b1, w2, b2)
    assert out.shape == (B, out_dim), f"bad shape {out.shape}"
    assert jnp.allclose(out, ref, atol=5e-3, rtol=5e-3), "mismatch vs bf16 reference"
    ref_f32 = jnp.maximum(x @ w1 + b1, 0.0) @ w2 + b2
    assert jnp.allclose(out, ref_f32, atol=1e-1, rtol=1e-1), "mismatch vs f32 reference"

    # Test 2: ragged batch that exercises the >=2-tile (megacore) path and the
    # masked partial last block — no wrapper-side padding or slicing.
    B2 = 300
    x2 = jax.random.normal(kx2, (B2, in_dim), dtype=jnp.float32)
    out2 = jax.block_until_ready(prediction_mlp(x2, w1, b1, w2, b2))
    ref2 = _reference(x2, w1, b1, w2, b2)
    assert out2.shape == (B2, out_dim), f"bad shape {out2.shape}"
    assert jnp.allclose(out2, ref2, atol=5e-3, rtol=5e-3), "mismatch (ragged batch)"

    print("KERNEL_OK")
</pallas_src>

<mosaic_0001>
module attributes {stable_mosaic.version = 11 : i64} {
  func.func @_mlp_kernel(%arg0: i32, %arg1: memref<32x512xf32, #tpu.memory_space<vmem>>, %arg2: memref<512x256xbf16, #tpu.memory_space<vmem>>, %arg3: memref<1x256xf32, #tpu.memory_space<vmem>>, %arg4: memref<256x512xbf16, #tpu.memory_space<vmem>>, %arg5: memref<1x512xf32, #tpu.memory_space<vmem>>, %arg6: memref<32x512xf32, #tpu.memory_space<vmem>>) attributes {dimension_semantics = [#tpu.dimension_semantics<parallel>], iteration_bounds = array<i64: 1>, scalar_prefetch = 0 : i64, scratch_operands = 0 : i64, tpu.core_type = #tpu.core_type<tc>, window_params = [{transform_indices = @transform_0, window_bounds = array<i64: 32, 512>}, {pipeline_mode = #tpu.pipeline_mode<synchronous>, transform_indices = @transform_1, window_bounds = array<i64: 512, 256>}, {pipeline_mode = #tpu.pipeline_mode<synchronous>, transform_indices = @transform_2, window_bounds = array<i64: 1, 256>}, {pipeline_mode = #tpu.pipeline_mode<synchronous>, transform_indices = @transform_3, window_bounds = array<i64: 256, 512>}, {pipeline_mode = #tpu.pipeline_mode<synchronous>, transform_indices = @transform_4, window_bounds = array<i64: 1, 512>}, {transform_indices = @transform_5, window_bounds = array<i64: 32, 512>}]} {
    %c0 = arith.constant 0 : index
    %c0_0 = arith.constant 0 : index
    %0 = vector.load %arg1[%c0, %c0_0] : memref<32x512xf32, #tpu.memory_space<vmem>>, vector<32x512xf32>
    %1 = arith.truncf %0 : vector<32x512xf32> to vector<32x512xbf16>
    %c0_1 = arith.constant 0 : index
    %c0_2 = arith.constant 0 : index
    %2 = vector.load %arg2[%c0_1, %c0_2] : memref<512x256xbf16, #tpu.memory_space<vmem>>, vector<512x256xbf16>
    %cst = arith.constant dense<0.000000e+00> : vector<32x256xf32>
    %3 = tpu.matmul %1, %2, %cst {dimension_numbers = #tpu.dot_dimension_numbers<[1], [0], [0], [1], [0, 0, 1, 1], [], []>} : vector<32x512xbf16>, vector<512x256xbf16>, vector<32x256xf32> -> vector<32x256xf32>
    %c0_3 = arith.constant 0 : index
    %c0_4 = arith.constant 0 : index
    %4 = vector.load %arg3[%c0_3, %c0_4] : memref<1x256xf32, #tpu.memory_space<vmem>>, vector<1x256xf32>
    %5 = vector.broadcast %4 : vector<1x256xf32> to vector<32x256xf32>
    %6 = arith.addf %3, %5 : vector<32x256xf32>
    %cst_5 = arith.constant 0.000000e+00 : f32
    %7 = vector.broadcast %cst_5 : f32 to vector<32x256xf32>
    %8 = arith.maximumf %6, %7 : vector<32x256xf32>
    %9 = arith.truncf %8 : vector<32x256xf32> to vector<32x256xbf16>
    %c0_6 = arith.constant 0 : index
    %c0_7 = arith.constant 0 : index
    %10 = vector.load %arg4[%c0_6, %c0_7] : memref<256x512xbf16, #tpu.memory_space<vmem>>, vector<256x512xbf16>
    %cst_8 = arith.constant dense<0.000000e+00> : vector<32x512xf32>
    %11 = tpu.matmul %9, %10, %cst_8 {dimension_numbers = #tpu.dot_dimension_numbers<[1], [0], [0], [1], [0, 0, 1, 1], [], []>} : vector<32x256xbf16>, vector<256x512xbf16>, vector<32x512xf32> -> vector<32x512xf32>
    %c0_9 = arith.constant 0 : index
    %c0_10 = arith.constant 0 : index
    %12 = vector.load %arg5[%c0_9, %c0_10] : memref<1x512xf32, #tpu.memory_space<vmem>>, vector<1x512xf32>
    %13 = vector.broadcast %12 : vector<1x512xf32> to vector<32x512xf32>
    %14 = arith.addf %11, %13 : vector<32x512xf32>
    %c0_11 = arith.constant 0 : index
    %c0_12 = arith.constant 0 : index
    %15 = vector.load %arg6[%c0_11, %c0_12] : memref<32x512xf32, #tpu.memory_space<vmem>>, vector<32x512xf32>
    tpu.vector_store %arg6[%c0_11, %c0_12], %14 {strides = array<i32>} : memref<32x512xf32, #tpu.memory_space<vmem>>, vector<32x512xf32>,
    return
  }
  func.func @transform_0(%arg0: i32) -> (i32, i32) {
    %c0_i32 = arith.constant 0 : i32
    %c0_i32_0 = arith.constant 0 : i32
    return %arg0, %c0_i32 : i32, i32
  }
  func.func @transform_1(%arg0: i32) -> (i32, i32) {
    %c0_i32 = arith.constant 0 : i32
    %c0_i32_0 = arith.constant 0 : i32
    %c0_i32_1 = arith.constant 0 : i32
    return %c0_i32, %c0_i32_0 : i32, i32
  }
  func.func @transform_2(%arg0: i32) -> (i32, i32) {
    %c0_i32 = arith.constant 0 : i32
    %c0_i32_0 = arith.constant 0 : i32
    %c0_i32_1 = arith.constant 0 : i32
    return %c0_i32, %c0_i32_0 : i32, i32
  }
  func.func @transform_3(%arg0: i32) -> (i32, i32) {
    %c0_i32 = arith.constant 0 : i32
    %c0_i32_0 = arith.constant 0 : i32
    %c0_i32_1 = arith.constant 0 : i32
    return %c0_i32, %c0_i32_0 : i32, i32
  }
  func.func @transform_4(%arg0: i32) -> (i32, i32) {
    %c0_i32 = arith.constant 0 : i32
    %c0_i32_0 = arith.constant 0 : i32
    %c0_i32_1 = arith.constant 0 : i32
    return %c0_i32, %c0_i32_0 : i32, i32
  }
  func.func @transform_5(%arg0: i32) -> (i32, i32) {
    %c0_i32 = arith.constant 0 : i32
    %c0_i32_0 = arith.constant 0 : i32
    return %arg0, %c0_i32 : i32, i32
  }
}

</mosaic_0001>

<llo_original>
// kernel: tpu_custom_call.1
$region0: #{tpu_custom_call.1}
  #allocation0 [shape = 'u32[]', space=smem, size = 0x4, offset = 0x4, fixed_abs, tag = 'smem constant byte address 0x4 - core index']
  #allocation1 [shape = 'u32[144,128]{1,0:T(1,128)}', space=vmem, size = 0x12000, scoped, tag = 'internal scratch']
  %s0 = inlined_call_operand.hbm [shape: f32[32,512], index: 0, kind: input, shape index: {}]
  %s1 = inlined_call_operand.hbm [shape: bf16[512,256], index: 1, kind: input, shape index: {}]
  %s2 = inlined_call_operand.vmem [shape: f32[1,256], index: 2, kind: input, shape index: {}]
  %s3 = inlined_call_operand.hbm [shape: bf16[256,512], index: 3, kind: input, shape index: {}]
  %s4 = inlined_call_operand.vmem [shape: f32[1,512], index: 4, kind: input, shape index: {}]
  %s5 = inlined_call_operand.hbm [shape: f32[32,512], index: 5, kind: output, shape index: {}]
  %s6 = sld [smem:[#allocation0]]
  $region42: #{tpu_custom_call.1} parent=0
    _
  %s8 = ssub.s32 1, %s6
  %s9 = scalar_select 0, %s8, %s6
  $region1: #{tpu_custom_call.1} parent=0
    #allocation2 [shape = 'u8[65536]{0}', space=vmem, size = 0x10000, scoped, tag = 'input window, operand 0, single buffered']
    #allocation3 [shape = 's32[1]{0}', space=sflag, size = 0x4, scoped, tag = 'scoped memory for tpu_custom_call.1']
    #allocation4 [shape = 's32[1]{0}', space=sflag, size = 0x4, scoped, tag = 'scoped memory for tpu_custom_call.1']
    #allocation5 [shape = 'u8[262144]{0}', space=vmem, size = 0x40000, scoped, tag = 'input window, operand 1, single buffered']
    #allocation6 [shape = 's32[1]{0}', space=sflag, size = 0x4, scoped, tag = 'scoped memory for tpu_custom_call.1']
    #allocation7 [shape = 'u8[262144]{0}', space=vmem, size = 0x40000, scoped, tag = 'input window, operand 3, single buffered']
    #allocation8 [shape = 'u8[65536]{0}', space=vmem, size = 0x10000, scoped, tag = 'output window, operand 0, single buffered']
    %10 = vsyncpa [#allocation3], 0
    %11 = vsyncpa [#allocation6], 0
    %12 = vsyncpa [#allocation4], 0
    // Predicated region
    $region2: #{tpu_custom_call.1} parent=1 // pred_check
      _
    $region3: #{tpu_custom_call.1} parent=1 // pred_check_branch
      %14 = sbr.rel (0) target = $region5
    $region4: #{tpu_custom_call.1} parent=1 // pred_region
      %s16 = ssub.s32 2048, 2048
      %17 = vsyncadd [#allocation3], %s16
      %s18 = sshll.u32 [#allocation2], 4
      %s19 = int_to_ptr.vmem [resolvable:$true] %s18
      %24 = dma.hbm_to_vmem [thread:$0]  %s0, 2048, %s19, [#allocation3], 512, 512, 32
    $region5: #{tpu_custom_call.1} parent=1 // pred_fallthru
      _
    // Predicated region
    $region6: #{tpu_custom_call.1} parent=1 // pred_check
      _
    $region7: #{tpu_custom_call.1} parent=1 // pred_check_branch
      %26 = sbr.rel (0) target = $region9
    $region8: #{tpu_custom_call.1} parent=1 // pred_region
      %s28 = ssub.s32 8192, 8192
      %29 = vsyncadd [#allocation6], %s28
      %s30 = sshll.u32 [#allocation5], 4
      %s31 = int_to_ptr.vmem [resolvable:$true] %s30
      %36 = dma.hbm_to_vmem [thread:$0]  %s1, 8192, %s31, [#allocation6], 128, 128, 8
    $region9: #{tpu_custom_call.1} parent=1 // pred_fallthru
      _
    // Predicated region
    $region10: #{tpu_custom_call.1} parent=1 // pred_check
      _
    $region11: #{tpu_custom_call.1} parent=1 // pred_check_branch
      %38 = sbr.rel (0) target = $region13
    $region12: #{tpu_custom_call.1} parent=1 // pred_region
      _
    $region13: #{tpu_custom_call.1} parent=1 // pred_fallthru
      _
    // Predicated region
    $region14: #{tpu_custom_call.1} parent=1 // pred_check
      _
    $region15: #{tpu_custom_call.1} parent=1 // pred_check_branch
      %40 = sbr.rel (0) target = $region17
    $region16: #{tpu_custom_call.1} parent=1 // pred_region
      %s42 = ssub.s32 8192, 8192
      %43 = vsyncadd [#allocation6], %s42
      %s44 = sshll.u32 [#allocation7], 4
      %s45 = int_to_ptr.vmem [resolvable:$true] %s44
      %50 = dma.hbm_to_vmem [thread:$0]  %s3, 8192, %s45, [#allocation6], 256, 256, 16
    $region17: #{tpu_custom_call.1} parent=1 // pred_fallthru
      _
    // Predicated region
    $region18: #{tpu_custom_call.1} parent=1 // pred_check
      _
    $region19: #{tpu_custom_call.1} parent=1 // pred_check_branch
      %52 = sbr.rel (0) target = $region21
    $region20: #{tpu_custom_call.1} parent=1 // pred_region
      _
    $region21: #{tpu_custom_call.1} parent=1 // pred_fallthru
      _
    // Predicated region
    $region22: #{tpu_custom_call.1} parent=1 // pred_check
      _
    $region23: #{tpu_custom_call.1} parent=1 // pred_check_branch
      %54 = sbr.rel (0) target = $region25
    $region24: #{tpu_custom_call.1} parent=1 // pred_region
      %55 = dma.done [#allocation3], 2048
    $region25: #{tpu_custom_call.1} parent=1 // pred_fallthru
      _
    // Predicated region
    $region26: #{tpu_custom_call.1} parent=1 // pred_check
      _
    $region27: #{tpu_custom_call.1} parent=1 // pred_check_branch
      %57 = sbr.rel (0) target = $region29
    $region28: #{tpu_custom_call.1} parent=1 // pred_region
      %58 = dma.done [#allocation6], 8192
    $region29: #{tpu_custom_call.1} parent=1 // pred_fallthru
      _
    // Predicated region
    $region30: #{tpu_custom_call.1} parent=1 // pred_check
      _
    $region31: #{tpu_custom_call.1} parent=1 // pred_check_branch
      %60 = sbr.rel (0) target = $region33
    $region32: #{tpu_custom_call.1} parent=1 // pred_region
      %61 = dma.done [#allocation6], 8192
    $region33: #{tpu_custom_call.1} parent=1 // pred_fallthru
      _
    %v62 = vld [vmem:[#allocation2] sm:$0xff]
    %v63 = vld [vmem:[#allocation2 + $0x8] sm:$0xff]
    %v64 = vld [vmem:[#allocation2 + $0x10] sm:$0xff]
    %v65 = vld [vmem:[#allocation2 + $0x18] sm:$0xff]
    %v66 = vld [vmem:[#allocation2 + $0x20] sm:$0xff]
    %v67 = vld [vmem:[#allocation2 + $0x28] sm:$0xff]
    %v68 = vld [vmem:[#allocation2 + $0x30] sm:$0xff]
    %v69 = vld [vmem:[#allocation2 + $0x38] sm:$0xff]
    %v70 = vld [vmem:[#allocation2 + $0x40] sm:$0xff]
    %v71 = vld [vmem:[#allocation2 + $0x48] sm:$0xff]
    %v72 = vld [vmem:[#allocation2 + $0x50] sm:$0xff]
    %v73 = vld [vmem:[#allocation2 + $0x58] sm:$0xff]
    %v74 = vld [vmem:[#allocation2 + $0x60] sm:$0xff]
    %v75 = vld [vmem:[#allocation2 + $0x68] sm:$0xff]
    %v76 = vld [vmem:[#allocation2 + $0x70] sm:$0xff]
    %v77 = vld [vmem:[#allocation2 + $0x78] sm:$0xff]
    %v78 = vpack.c.bf16 %v66, %v62
    %v79 = vpack.c.bf16 %v67, %v63
    %v80 = vpack.c.bf16 %v68, %v64
    %v81 = vpack.c.bf16 %v69, %v65
    %v82 = vpack.c.bf16 %v74, %v70
    %v83 = vpack.c.bf16 %v75, %v71
    %v84 = vpack.c.bf16 %v76, %v72
    %v85 = vpack.c.bf16 %v77, %v73
    %v86 = vld [vmem:[#allocation5] sm:$0xff]
    %v87 = vld [vmem:[#allocation5 + $0x8] sm:$0xff]
    %v88 = vld [vmem:[#allocation5 + $0x10] sm:$0xff]
    %v89 = vld [vmem:[#allocation5 + $0x18] sm:$0xff]
    %v90 = vld [vmem:[#allocation5 + $0x20] sm:$0xff]
    %v91 = vld [vmem:[#allocation5 + $0x28] sm:$0xff]
    %v92 = vld [vmem:[#allocation5 + $0x30] sm:$0xff]
    %v93 = vld [vmem:[#allocation5 + $0x38] sm:$0xff]
    %v94 = vld [vmem:[#allocation5 + $0x40] sm:$0xff]
    %v95 = vld [vmem:[#allocation5 + $0x48] sm:$0xff]
    %v96 = vld [vmem:[#allocation5 + $0x50] sm:$0xff]
    %v97 = vld [vmem:[#allocation5 + $0x58] sm:$0xff]
    %v98 = vld [vmem:[#allocation5 + $0x60] sm:$0xff]
    %v99 = vld [vmem:[#allocation5 + $0x68] sm:$0xff]
    %v100 = vld [vmem:[#allocation5 + $0x70] sm:$0xff]
    %v101 = vld [vmem:[#allocation5 + $0x78] sm:$0xff]
    %v102 = vld [vmem:[#allocation5 + $0x80] sm:$0xff]
    %v103 = vld [vmem:[#allocation5 + $0x88] sm:$0xff]
    %v104 = vld [vmem:[#allocation5 + $0x90] sm:$0xff]
    %v105 = vld [vmem:[#allocation5 + $0x98] sm:$0xff]
    %v106 = vld [vmem:[#allocation5 + $0xa0] sm:$0xff]
    %v107 = vld [vmem:[#allocation5 + $0xa8] sm:$0xff]
    %v108 = vld [vmem:[#allocation5 + $0xb0] sm:$0xff]
    %v109 = vld [vmem:[#allocation5 + $0xb8] sm:$0xff]
    %v110 = vld [vmem:[#allocation5 + $0xc0] sm:$0xff]
    %v111 = vld [vmem:[#allocation5 + $0xc8] sm:$0xff]
    %v112 = vld [vmem:[#allocation5 + $0xd0] sm:$0xff]
    %v113 = vld [vmem:[#allocation5 + $0xd8] sm:$0xff]
    %v114 = vld [vmem:[#allocation5 + $0xe0] sm:$0xff]
    %v115 = vld [vmem:[#allocation5 + $0xe8] sm:$0xff]
    %v116 = vld [vmem:[#allocation5 + $0xf0] sm:$0xff]
    %v117 = vld [vmem:[#allocation5 + $0xf8] sm:$0xff]
    %v118 = vld [vmem:[#allocation5 + $0x100] sm:$0xff]
    %v119 = vld [vmem:[#allocation5 + $0x108] sm:$0xff]
    %v120 = vld [vmem:[#allocation5 + $0x110] sm:$0xff]
    %v121 = vld [vmem:[#allocation5 + $0x118] sm:$0xff]
    %v122 = vld [vmem:[#allocation5 + $0x120] sm:$0xff]
    %v123 = vld [vmem:[#allocation5 + $0x128] sm:$0xff]
    %v124 = vld [vmem:[#allocation5 + $0x130] sm:$0xff]
    %v125 = vld [vmem:[#allocation5 + $0x138] sm:$0xff]
    %v126 = vld [vmem:[#allocation5 + $0x140] sm:$0xff]
    %v127 = vld [vmem:[#allocation5 + $0x148] sm:$0xff]
    %v128 = vld [vmem:[#allocation5 + $0x150] sm:$0xff]
    %v129 = vld [vmem:[#allocation5 + $0x158] sm:$0xff]
    %v130 = vld [vmem:[#allocation5 + $0x160] sm:$0xff]
    %v131 = vld [vmem:[#allocation5 + $0x168] sm:$0xff]
    %v132 = vld [vmem:[#allocation5 + $0x170] sm:$0xff]
    %v133 = vld [vmem:[#allocation5 + $0x178] sm:$0xff]
    %v134 = vld [vmem:[#allocation5 + $0x180] sm:$0xff]
    %v135 = vld [vmem:[#allocation5 + $0x188] sm:$0xff]
    %v136 = vld [vmem:[#allocation5 + $0x190] sm:$0xff]
    %v137 = vld [vmem:[#allocation5 + $0x198] sm:$0xff]
    %v138 = vld [vmem:[#allocation5 + $0x1a0] sm:$0xff]
    %v139 = vld [vmem:[#allocation5 + $0x1a8] sm:$0xff]
    %v140 = vld [vmem:[#allocation5 + $0x1b0] sm:$0xff]
    %v141 = vld [vmem:[#allocation5 + $0x1b8] sm:$0xff]
    %v142 = vld [vmem:[#allocation5 + $0x1c0] sm:$0xff]
    %v143 = vld [vmem:[#allocation5 + $0x1c8] sm:$0xff]
    %v144 = vld [vmem:[#allocation5 + $0x1d0] sm:$0xff]
    %v145 = vld [vmem:[#allocation5 + $0x1d8] sm:$0xff]
    %v146 = vld [vmem:[#allocation5 + $0x1e0] sm:$0xff]
    %v147 = vld [vmem:[#allocation5 + $0x1e8] sm:$0xff]
    %v148 = vld [vmem:[#allocation5 + $0x1f0] sm:$0xff]
    %v149 = vld [vmem:[#allocation5 + $0x1f8] sm:$0xff]
    %v150 = vld [vmem:[%s2] sm:$0x3]
    %v152 = vlaneseq
    %v153 = vshrl.u32 %v152, 7
    %v154 = vsub.s32 0, %v153
    %v155 = vrot.slane %v150, %v154
    %v156 = vlaneseq
    %v157 = vshrl.u32 %v156, 7
    %v158 = vsub.s32 1, %v157
    %v159 = vrot.slane %v150, %v158
    %v226 = vunpack.c.l.b16 %v86
    %v227 = vunpack.c.h.b16 %v86
    %v228 = vunpack.c.l.b16 %v87
    %v229 = vunpack.c.h.b16 %v87
    %v230 = vunpack.c.l.b16 %v88
    %v231 = vunpack.c.h.b16 %v88
    %v232 = vunpack.c.l.b16 %v89
    %v233 = vunpack.c.h.b16 %v89
    %v234 = vunpack.c.l.b16 %v90
    %v235 = vunpack.c.h.b16 %v90
    %v236 = vunpack.c.l.b16 %v91
    %v237 = vunpack.c.h.b16 %v91
    %v238 = vunpack.c.l.b16 %v92
    %v239 = vunpack.c.h.b16 %v92
    %v240 = vunpack.c.l.b16 %v93
    %v241 = vunpack.c.h.b16 %v93
    %v242 = vunpack.c.l.b16 %v94
    %v243 = vunpack.c.h.b16 %v94
    %v244 = vunpack.c.l.b16 %v95
    %v245 = vunpack.c.h.b16 %v95
    %v246 = vunpack.c.l.b16 %v96
    %v247 = vunpack.c.h.b16 %v96
    %v248 = vunpack.c.l.b16 %v97
    %v249 = vunpack.c.h.b16 %v97
    %v250 = vunpack.c.l.b16 %v98
    %v251 = vunpack.c.h.b16 %v98
    %v252 = vunpack.c.l.b16 %v99
    %v253 = vunpack.c.h.b16 %v99
    %v254 = vunpack.c.l.b16 %v100
    %v255 = vunpack.c.h.b16 %v100
    %v256 = vunpack.c.l.b16 %v101
    %v257 = vunpack.c.h.b16 %v101
    %v258 = vunpack.c.l.b16 %v102
    %v259 = vunpack.c.h.b16 %v102
    %v260 = vunpack.c.l.b16 %v103
    %v261 = vunpack.c.h.b16 %v103
    %v262 = vunpack.c.l.b16 %v104
    %v263 = vunpack.c.h.b16 %v104
    %v264 = vunpack.c.l.b16 %v105
    %v265 = vunpack.c.h.b16 %v105
    %v266 = vunpack.c.l.b16 %v106
    %v267 = vunpack.c.h.b16 %v106
    %v268 = vunpack.c.l.b16 %v107
    %v269 = vunpack.c.h.b16 %v107
    %v270 = vunpack.c.l.b16 %v108
    %v271 = vunpack.c.h.b16 %v108
    %v272 = vunpack.c.l.b16 %v109
    %v273 = vunpack.c.h.b16 %v109
    %v274 = vunpack.c.l.b16 %v110
    %v275 = vunpack.c.h.b16 %v110
    %v276 = vunpack.c.l.b16 %v111
    %v277 = vunpack.c.h.b16 %v111
    %v278 = vunpack.c.l.b16 %v112
    %v279 = vunpack.c.h.b16 %v112
    %v280 = vunpack.c.l.b16 %v113
    %v281 = vunpack.c.h.b16 %v113
    %v282 = vunpack.c.l.b16 %v114
    %v283 = vunpack.c.h.b16 %v114
    %v284 = vunpack.c.l.b16 %v115
    %v285 = vunpack.c.h.b16 %v115
    %v286 = vunpack.c.l.b16 %v116
    %v287 = vunpack.c.h.b16 %v116
    %v288 = vunpack.c.l.b16 %v117
    %v289 = vunpack.c.h.b16 %v117
    %v290 = vunpack.c.l.b16 %v118
    %v291 = vunpack.c.h.b16 %v118
    %v292 = vunpack.c.l.b16 %v119
    %v293 = vunpack.c.h.b16 %v119
    %v294 = vunpack.c.l.b16 %v120
    %v295 = vunpack.c.h.b16 %v120
    %v296 = vunpack.c.l.b16 %v121
    %v297 = vunpack.c.h.b16 %v121
    %v298 = vunpack.c.l.b16 %v122
    %v299 = vunpack.c.h.b16 %v122
    %v300 = vunpack.c.l.b16 %v123
    %v301 = vunpack.c.h.b16 %v123
    %v302 = vunpack.c.l.b16 %v124
    %v303 = vunpack.c.h.b16 %v124
    %v304 = vunpack.c.l.b16 %v125
    %v305 = vunpack.c.h.b16 %v125
    %v306 = vunpack.c.l.b16 %v126
    %v307 = vunpack.c.h.b16 %v126
    %v308 = vunpack.c.l.b16 %v127
    %v309 = vunpack.c.h.b16 %v127
    %v310 = vunpack.c.l.b16 %v128
    %v311 = vunpack.c.h.b16 %v128
    %v312 = vunpack.c.l.b16 %v129
    %v313 = vunpack.c.h.b16 %v129
    %v314 = vunpack.c.l.b16 %v130
    %v315 = vunpack.c.h.b16 %v130
    %v316 = vunpack.c.l.b16 %v131
    %v317 = vunpack.c.h.b16 %v131
    %v318 = vunpack.c.l.b16 %v132
    %v319 = vunpack.c.h.b16 %v132
    %v320 = vunpack.c.l.b16 %v133
    %v321 = vunpack.c.h.b16 %v133
    %v322 = vunpack.c.l.b16 %v134
    %v323 = vunpack.c.h.b16 %v134
    %v324 = vunpack.c.l.b16 %v135
    %v325 = vunpack.c.h.b16 %v135
    %v326 = vunpack.c.l.b16 %v136
    %v327 = vunpack.c.h.b16 %v136
    %v328 = vunpack.c.l.b16 %v137
    %v329 = vunpack.c.h.b16 %v137
    %v330 = vunpack.c.l.b16 %v138
    %v331 = vunpack.c.h.b16 %v138
    %v332 = vunpack.c.l.b16 %v139
    %v333 = vunpack.c.h.b16 %v139
    %v334 = vunpack.c.l.b16 %v140
    %v335 = vunpack.c.h.b16 %v140
    %v336 = vunpack.c.l.b16 %v141
    %v337 = vunpack.c.h.b16 %v141
    %v338 = vunpack.c.l.b16 %v142
    %v339 = vunpack.c.h.b16 %v142
    %v340 = vunpack.c.l.b16 %v143
    %v341 = vunpack.c.h.b16 %v143
    %v342 = vunpack.c.l.b16 %v144
    %v343 = vunpack.c.h.b16 %v144
    %v344 = vunpack.c.l.b16 %v145
    %v345 = vunpack.c.h.b16 %v145
    %v346 = vunpack.c.l.b16 %v146
    %v347 = vunpack.c.h.b16 %v146
    %v348 = vunpack.c.l.b16 %v147
    %v349 = vunpack.c.h.b16 %v147
    %v350 = vunpack.c.l.b16 %v148
    %v351 = vunpack.c.h.b16 %v148
    %v352 = vunpack.c.l.b16 %v149
    %v353 = vunpack.c.h.b16 %v149
    %v354 = vpack.c.b16 %v228, %v226
    %v355 = vpack.c.b16 %v229, %v227
    %v356 = vpack.c.b16 %v232, %v230
    %v357 = vpack.c.b16 %v233, %v231
    %v358 = vpack.c.b16 %v236, %v234
    %v359 = vpack.c.b16 %v237, %v235
    %v360 = vpack.c.b16 %v240, %v238
    %v361 = vpack.c.b16 %v241, %v239
    %v362 = vpack.c.b16 %v244, %v242
    %v363 = vpack.c.b16 %v245, %v243
    %v364 = vpack.c.b16 %v248, %v246
    %v365 = vpack.c.b16 %v249, %v247
    %v366 = vpack.c.b16 %v252, %v250
    %v367 = vpack.c.b16 %v253, %v251
    %v368 = vpack.c.b16 %v256, %v254
    %v369 = vpack.c.b16 %v257, %v255
    %v370 = vpack.c.b16 %v260, %v258
    %v371 = vpack.c.b16 %v261, %v259
    %v372 = vpack.c.b16 %v264, %v262
    %v373 = vpack.c.b16 %v265, %v263
    %v374 = vpack.c.b16 %v268, %v266
    %v375 = vpack.c.b16 %v269, %v267
    %v376 = vpack.c.b16 %v272, %v270
    %v377 = vpack.c.b16 %v273, %v271
    %v378 = vpack.c.b16 %v276, %v274
    %v379 = vpack.c.b16 %v277, %v275
    %v380 = vpack.c.b16 %v280, %v278
    %v381 = vpack.c.b16 %v281, %v279
    %v382 = vpack.c.b16 %v284, %v282
    %v383 = vpack.c.b16 %v285, %v283
    %v384 = vpack.c.b16 %v288, %v286
    %v385 = vpack.c.b16 %v289, %v287
    %v386 = vpack.c.b16 %v292, %v290
    %v387 = vpack.c.b16 %v293, %v291
    %v388 = vpack.c.b16 %v296, %v294
    %v389 = vpack.c.b16 %v297, %v295
    %v390 = vpack.c.b16 %v300, %v298
    %v391 = vpack.c.b16 %v301, %v299
    %v392 = vpack.c.b16 %v304, %v302
    %v393 = vpack.c.b16 %v305, %v303
    %v394 = vpack.c.b16 %v308, %v306
    %v395 = vpack.c.b16 %v309, %v307
    %v396 = vpack.c.b16 %v312, %v310
    %v397 = vpack.c.b16 %v313, %v311
    %v398 = vpack.c.b16 %v316, %v314
    %v399 = vpack.c.b16 %v317, %v315
    %v400 = vpack.c.b16 %v320, %v318
    %v401 = vpack.c.b16 %v321, %v319
    %v402 = vpack.c.b16 %v324, %v322
    %v403 = vpack.c.b16 %v325, %v323
    %v404 = vpack.c.b16 %v328, %v326
    %v405 = vpack.c.b16 %v329, %v327
    %v406 = vpack.c.b16 %v332, %v330
    %v407 = vpack.c.b16 %v333, %v331
    %v408 = vpack.c.b16 %v336, %v334
    %v409 = vpack.c.b16 %v337, %v335
    %v410 = vpack.c.b16 %v340, %v338
    %v411 = vpack.c.b16 %v341, %v339
    %v412 = vpack.c.b16 %v344, %v342
    %v413 = vpack.c.b16 %v345, %v343
    %v414 = vpack.c.b16 %v348, %v346
    %v415 = vpack.c.b16 %v349, %v347
    %v416 = vpack.c.b16 %v352, %v350
    %v417 = vpack.c.b16 %v353, %v351
    %482 = vmatprep.subr.bf16.mxu0 %v355
    %483 = vmatpush1.bf16.msra.mxu0 %v354
    %484 = vmatprep.subr.bf16.mxu0 %v357
    %485 = vmatpush1.bf16.msra.mxu0 %v356
    %486 = vmatprep.subr.bf16.mxu0 %v359
    %487 = vmatpush1.bf16.msra.mxu0 %v358
    %488 = vmatprep.subr.bf16.mxu0 %v361
    %489 = vmatpush1.bf16.msra.mxu0 %v360
    %490 = vmatprep.subr.bf16.mxu0 %v363
    %491 = vmatpush1.bf16.msra.mxu0 %v362
    %492 = vmatprep.subr.bf16.mxu0 %v365
    %493 = vmatpush1.bf16.msra.mxu0 %v364
    %494 = vmatprep.subr.bf16.mxu0 %v367
    %495 = vmatpush1.bf16.msra.mxu0 %v366
    %496 = vmatprep.subr.bf16.mxu0 %v369
    %497 = vmatpush1.bf16.msra.mxu0 %v368
    %498 = vmatprep.subr.bf16.mxu0 %v371
    %499 = vmatpush1.bf16.msra.mxu0 %v370
    %500 = vmatprep.subr.bf16.mxu0 %v373
    %501 = vmatpush1.bf16.msra.mxu0 %v372
    %502 = vmatprep.subr.bf16.mxu0 %v375
    %503 = vmatpush1.bf16.msra.mxu0 %v374
    %504 = vmatprep.subr.bf16.mxu0 %v377
    %505 = vmatpush1.bf16.msra.mxu0 %v376
    %506 = vmatprep.subr.bf16.mxu0 %v379
    %507 = vmatpush1.bf16.msra.mxu0 %v378
    %508 = vmatprep.subr.bf16.mxu0 %v381
    %509 = vmatpush1.bf16.msra.mxu0 %v380
    %510 = vmatprep.subr.bf16.mxu0 %v383
    %511 = vmatpush1.bf16.msra.mxu0 %v382
    %512 = vmatprep.subr.bf16.mxu0 %v385
    %513 = vmatpush1.bf16.msra.mxu0 %v384
    %514 = vmatprep.mubr.bf16.mxu0 %v79
    %515 = vmatmul.mubr.bf16.gmra.mrb[0].mxu0 %v78
    %v516 = vpop.f32.mrb[0].mxu0
    %v517 = vadd.f32 %v155, %v516
    %v518 = vpop.f32.mrb[0].mxu0
    %v519 = vadd.f32 %v159, %v518
    %v520 = vpop.f32.mrb[0].mxu0
    %v521 = vadd.f32 %v155, %v520
    %v522 = vpop.f32.mrb[0].mxu0
    %v523 = vadd.f32 %v159, %v522
    %524 = vmatprep.mubr.bf16.mxu0 %v83
    %525 = vmatmul.mubr.bf16.gmra.mrb[0].mxu0 %v82
    %v526 = vpop.f32.mrb[0].mxu0
    %v527 = vadd.f32 %v155, %v526
    %v528 = vpop.f32.mrb[0].mxu0
    %v529 = vadd.f32 %v159, %v528
    %v530 = vpop.f32.mrb[0].mxu0
    %v531 = vadd.f32 %v155, %v530
    %v532 = vpop.f32.mrb[0].mxu0
    %v533 = vadd.f32 %v159, %v532
    %534 = vdwg.mxu0
    %535 = vmatprep.subr.bf16.mxu0 %v387
    %536 = vmatpush1.bf16.msra.mxu0 %v386
    %537 = vmatprep.subr.bf16.mxu0 %v389
    %538 = vmatpush1.bf16.msra.mxu0 %v388
    %539 = vmatprep.subr.bf16.mxu0 %v391
    %540 = vmatpush1.bf16.msra.mxu0 %v390
    %541 = vmatprep.subr.bf16.mxu0 %v393
    %542 = vmatpush1.bf16.msra.mxu0 %v392
    %543 = vmatprep.subr.bf16.mxu0 %v395
    %544 = vmatpush1.bf16.msra.mxu0 %v394
    %545 = vmatprep.subr.bf16.mxu0 %v397
    %546 = vmatpush1.bf16.msra.mxu0 %v396
    %547 = vmatprep.subr.bf16.mxu0 %v399
    %548 = vmatpush1.bf16.msra.mxu0 %v398
    %549 = vmatprep.subr.bf16.mxu0 %v401
    %550 = vmatpush1.bf16.msra.mxu0 %v400
    %551 = vmatprep.subr.bf16.mxu0 %v403
    %552 = vmatpush1.bf16.msra.mxu0 %v402
    %553 = vmatprep.subr.bf16.mxu0 %v405
    %554 = vmatpush1.bf16.msra.mxu0 %v404
    %555 = vmatprep.subr.bf16.mxu0 %v407
    %556 = vmatpush1.bf16.msra.mxu0 %v406
    %557 = vmatprep.subr.bf16.mxu0 %v409
    %558 = vmatpush1.bf16.msra.mxu0 %v408
    %559 = vmatprep.subr.bf16.mxu0 %v411
    %560 = vmatpush1.bf16.msra.mxu0 %v410
    %561 = vmatprep.subr.bf16.mxu0 %v413
    %562 = vmatpush1.bf16.msra.mxu0 %v412
    %563 = vmatprep.subr.bf16.mxu0 %v415
    %564 = vmatpush1.bf16.msra.mxu0 %v414
    %565 = vmatprep.subr.bf16.mxu0 %v417
    %566 = vmatpush1.bf16.msra.mxu0 %v416
    %567 = vmatprep.mubr.bf16.mxu0 %v81
    %568 = vmatmul.mubr.bf16.gmra.mrb[0].mxu0 %v80
    %v569 = vpop.f32.mrb[0].mxu0
    %v570 = vadd.f32 %v517, %v569
    %v571 = vpop.f32.mrb[0].mxu0
    %v572 = vadd.f32 %v519, %v571
    %v573 = vpop.f32.mrb[0].mxu0
    %v574 = vadd.f32 %v521, %v573
    %v575 = vpop.f32.mrb[0].mxu0
    %v576 = vadd.f32 %v523, %v575
    %577 = vmatprep.mubr.bf16.mxu0 %v85
    %578 = vmatmul.mubr.bf16.gmra.mrb[0].mxu0 %v84
    %v579 = vpop.f32.mrb[0].mxu0
    %v580 = vadd.f32 %v527, %v579
    %v581 = vpop.f32.mrb[0].mxu0
    %v582 = vadd.f32 %v529, %v581
    %v583 = vpop.f32.mrb[0].mxu0
    %v584 = vadd.f32 %v531, %v583
    %v585 = vpop.f32.mrb[0].mxu0
    %v586 = vadd.f32 %v533, %v585
    %587 = vdwg.mxu0
    %v588 = vmax.f32 %v570, 0.0
    %v589 = vmax.f32 %v572, 0.0
    %v590 = vmax.f32 %v574, 0.0
    %v591 = vmax.f32 %v576, 0.0
    %v592 = vmax.f32 %v580, 0.0
    %v593 = vmax.f32 %v582, 0.0
    %v594 = vmax.f32 %v584, 0.0
    %v595 = vmax.f32 %v586, 0.0
    %v596 = vpack.c.bf16 %v590, %v588
    %v597 = vpack.c.bf16 %v591, %v589
    %v598 = vpack.c.bf16 %v594, %v592
    %v599 = vpack.c.bf16 %v595, %v593
    %v600 = vld [vmem:[#allocation7] sm:$0xff]
    %v601 = vld [vmem:[#allocation7 + $0x8] sm:$0xff]
    %v602 = vld [vmem:[#allocation7 + $0x10] sm:$0xff]
    %v603 = vld [vmem:[#allocation7 + $0x18] sm:$0xff]
    %v604 = vld [vmem:[#allocation7 + $0x20] sm:$0xff]
    %v605 = vld [vmem:[#allocation7 + $0x28] sm:$0xff]
    %v606 = vld [vmem:[#allocation7 + $0x30] sm:$0xff]
    %v607 = vld [vmem:[#allocation7 + $0x38] sm:$0xff]
    %v608 = vld [vmem:[#allocation7 + $0x40] sm:$0xff]
    %v609 = vld [vmem:[#allocation7 + $0x48] sm:$0xff]
    %v610 = vld [vmem:[#allocation7 + $0x50] sm:$0xff]
    %v611 = vld [vmem:[#allocation7 + $0x58] sm:$0xff]
    %v612 = vld [vmem:[#allocation7 + $0x60] sm:$0xff]
    %v613 = vld [vmem:[#allocation7 + $0x68] sm:$0xff]
    %v614 = vld [vmem:[#allocation7 + $0x70] sm:$0xff]
    %v615 = vld [vmem:[#allocation7 + $0x78] sm:$0xff]
    %v616 = vld [vmem:[#allocation7 + $0x80] sm:$0xff]
    %v617 = vld [vmem:[#allocation7 + $0x88] sm:$0xff]
    %v618 = vld [vmem:[#allocation7 + $0x90] sm:$0xff]
    %v619 = vld [vmem:[#allocation7 + $0x98] sm:$0xff]
    %v620 = vld [vmem:[#allocation7 + $0xa0] sm:$0xff]
    %v621 = vld [vmem:[#allocation7 + $0xa8] sm:$0xff]
    %v622 = vld [vmem:[#allocation7 + $0xb0] sm:$0xff]
    %v623 = vld [vmem:[#allocation7 + $0xb8] sm:$0xff]
    %v624 = vld [vmem:[#allocation7 + $0xc0] sm:$0xff]
    %v625 = vld [vmem:[#allocation7 + $0xc8] sm:$0xff]
    %v626 = vld [vmem:[#allocation7 + $0xd0] sm:$0xff]
    %v627 = vld [vmem:[#allocation7 + $0xd8] sm:$0xff]
    %v628 = vld [vmem:[#allocation7 + $0xe0] sm:$0xff]
    %v629 = vld [vmem:[#allocation7 + $0xe8] sm:$0xff]
    %v630 = vld [vmem:[#allocation7 + $0xf0] sm:$0xff]
    %v631 = vld [vmem:[#allocation7 + $0xf8] sm:$0xff]
    %v632 = vld [vmem:[#allocation7 + $0x100] sm:$0xff]
    %v633 = vld [vmem:[#allocation7 + $0x108] sm:$0xff]
    %v634 = vld [vmem:[#allocation7 + $0x110] sm:$0xff]
    %v635 = vld [vmem:[#allocation7 + $0x118] sm:$0xff]
    %v636 = vld [vmem:[#allocation7 + $0x120] sm:$0xff]
    %v637 = vld [vmem:[#allocation7 + $0x128] sm:$0xff]
    %v638 = vld [vmem:[#allocation7 + $0x130] sm:$0xff]
    %v639 = vld [vmem:[#allocation7 + $0x138] sm:$0xff]
    %v640 = vld [vmem:[#allocation7 + $0x140] sm:$0xff]
    %v641 = vld [vmem:[#allocation7 + $0x148] sm:$0xff]
    %v642 = vld [vmem:[#allocation7 + $0x150] sm:$0xff]
    %v643 = vld [vmem:[#allocation7 + $0x158] sm:$0xff]
    %v644 = vld [vmem:[#allocation7 + $0x160] sm:$0xff]
    %v645 = vld [vmem:[#allocation7 + $0x168] sm:$0xff]
    %v646 = vld [vmem:[#allocation7 + $0x170] sm:$0xff]
    %v647 = vld [vmem:[#allocation7 + $0x178] sm:$0xff]
    %v648 = vld [vmem:[#allocation7 + $0x180] sm:$0xff]
    %v649 = vld [vmem:[#allocation7 + $0x188] sm:$0xff]
    %v650 = vld [vmem:[#allocation7 + $0x190] sm:$0xff]
    %v651 = vld [vmem:[#allocation7 + $0x198] sm:$0xff]
    %v652 = vld [vmem:[#allocation7 + $0x1a0] sm:$0xff]
    %v653 = vld [vmem:[#allocation7 + $0x1a8] sm:$0xff]
    %v654 = vld [vmem:[#allocation7 + $0x1b0] sm:$0xff]
    %v655 = vld [vmem:[#allocation7 + $0x1b8] sm:$0xff]
    %v656 = vld [vmem:[#allocation7 + $0x1c0] sm:$0xff]
    %v657 = vld [vmem:[#allocation7 + $0x1c8] sm:$0xff]
    %v658 = vld [vmem:[#allocation7 + $0x1d0] sm:$0xff]
    %v659 = vld [vmem:[#allocation7 + $0x1d8] sm:$0xff]
    %v660 = vld [vmem:[#allocation7 + $0x1e0] sm:$0xff]
    %v661 = vld [vmem:[#allocation7 + $0x1e8] sm:$0xff]
    %v662 = vld [vmem:[#allocation7 + $0x1f0] sm:$0xff]
    %v663 = vld [vmem:[#allocation7 + $0x1f8] sm:$0xff]
    %v664 = vld [vmem:[%s4] sm:$0xf]
    %v666 = vlaneseq
    %v667 = vshrl.u32 %v666, 7
    %v668 = vsub.s32 0, %v667
    %v669 = vrot.slane %v664, %v668
    %v670 = vlaneseq
    %v671 = vshrl.u32 %v670, 7
    %v672 = vsub.s32 1, %v671
    %v673 = vrot.slane %v664, %v672
    %v674 = vlaneseq
    %v675 = vshrl.u32 %v674, 7
    %v676 = vsub.s32 2, %v675
    %v677 = vrot.slane %v664, %v676
    %v678 = vlaneseq
    %v679 = vshrl.u32 %v678, 7
    %v680 = vsub.s32 3, %v679
    %v681 = vrot.slane %v664, %v680
    %v750 = vunpack.c.l.b16 %v600
    %v751 = vunpack.c.h.b16 %v600
    %v752 = vunpack.c.l.b16 %v601
    %v753 = vunpack.c.h.b16 %v601
    %v754 = vunpack.c.l.b16 %v602
    %v755 = vunpack.c.h.b16 %v602
    %v756 = vunpack.c.l.b16 %v603
    %v757 = vunpack.c.h.b16 %v603
    %v758 = vunpack.c.l.b16 %v604
    %v759 = vunpack.c.h.b16 %v604
    %v760 = vunpack.c.l.b16 %v605
    %v761 = vunpack.c.h.b16 %v605
    %v762 = vunpack.c.l.b16 %v606
    %v763 = vunpack.c.h.b16 %v606
    %v764 = vunpack.c.l.b16 %v607
    %v765 = vunpack.c.h.b16 %v607
    %v766 = vunpack.c.l.b16 %v608
    %v767 = vunpack.c.h.b16 %v608
    %v768 = vunpack.c.l.b16 %v609
    %v769 = vunpack.c.h.b16 %v609
    %v770 = vunpack.c.l.b16 %v610
    %v771 = vunpack.c.h.b16 %v610
    %v772 = vunpack.c.l.b16 %v611
    %v773 = vunpack.c.h.b16 %v611
    %v774 = vunpack.c.l.b16 %v612
    %v775 = vunpack.c.h.b16 %v612
    %v776 = vunpack.c.l.b16 %v613
    %v777 = vunpack.c.h.b16 %v613
    %v778 = vunpack.c.l.b16 %v614
    %v779 = vunpack.c.h.b16 %v614
    %v780 = vunpack.c.l.b16 %v615
    %v781 = vunpack.c.h.b16 %v615
    %v782 = vunpack.c.l.b16 %v616
    %v783 = vunpack.c.h.b16 %v616
    %v784 = vunpack.c.l.b16 %v617
    %v785 = vunpack.c.h.b16 %v617
    %v786 = vunpack.c.l.b16 %v618
    %v787 = vunpack.c.h.b16 %v618
    %v788 = vunpack.c.l.b16 %v619
    %v789 = vunpack.c.h.b16 %v619
    %v790 = vunpack.c.l.b16 %v620
    %v791 = vunpack.c.h.b16 %v620
    %v792 = vunpack.c.l.b16 %v621
    %v793 = vunpack.c.h.b16 %v621
    %v794 = vunpack.c.l.b16 %v622
    %v795 = vunpack.c.h.b16 %v622
    %v796 = vunpack.c.l.b16 %v623
    %v797 = vunpack.c.h.b16 %v623
    %v798 = vunpack.c.l.b16 %v624
    %v799 = vunpack.c.h.b16 %v624
    %v800 = vunpack.c.l.b16 %v625
    %v801 = vunpack.c.h.b16 %v625
    %v802 = vunpack.c.l.b16 %v626
    %v803 = vunpack.c.h.b16 %v626
    %v804 = vunpack.c.l.b16 %v627
    %v805 = vunpack.c.h.b16 %v627
    %v806 = vunpack.c.l.b16 %v628
    %v807 = vunpack.c.h.b16 %v628
    %v808 = vunpack.c.l.b16 %v629
    %v809 = vunpack.c.h.b16 %v629
    %v810 = vunpack.c.l.b16 %v630
    %v811 = vunpack.c.h.b16 %v630
    %v812 = vunpack.c.l.b16 %v631
    %v813 = vunpack.c.h.b16 %v631
    %v814 = vunpack.c.l.b16 %v632
    %v815 = vunpack.c.h.b16 %v632
    %v816 = vunpack.c.l.b16 %v633
    %v817 = vunpack.c.h.b16 %v633
    %v818 = vunpack.c.l.b16 %v634
    %v819 = vunpack.c.h.b16 %v634
    %v820 = vunpack.c.l.b16 %v635
    %v821 = vunpack.c.h.b16 %v635
    %v822 = vunpack.c.l.b16 %v636
    %v823 = vunpack.c.h.b16 %v636
    %v824 = vunpack.c.l.b16 %v637
    %v825 = vunpack.c.h.b16 %v637
    %v826 = vunpack.c.l.b16 %v638
    %v827 = vunpack.c.h.b16 %v638
    %v828 = vunpack.c.l.b16 %v639
    %v829 = vunpack.c.h.b16 %v639
    %v830 = vunpack.c.l.b16 %v640
    %v831 = vunpack.c.h.b16 %v640
    %v832 = vunpack.c.l.b16 %v641
    %v833 = vunpack.c.h.b16 %v641
    %v834 = vunpack.c.l.b16 %v642
    %v835 = vunpack.c.h.b16 %v642
    %v836 = vunpack.c.l.b16 %v643
    %v837 = vunpack.c.h.b16 %v643
    %v838 = vunpack.c.l.b16 %v644
    %v839 = vunpack.c.h.b16 %v644
    %v840 = vunpack.c.l.b16 %v645
    %v841 = vunpack.c.h.b16 %v645
    %v842 = vunpack.c.l.b16 %v646
    %v843 = vunpack.c.h.b16 %v646
    %v844 = vunpack.c.l.b16 %v647
    %v845 = vunpack.c.h.b16 %v647
    %v846 = vunpack.c.l.b16 %v648
    %v847 = vunpack.c.h.b16 %v648
    %v848 = vunpack.c.l.b16 %v649
    %v849 = vunpack.c.h.b16 %v649
    %v850 = vunpack.c.l.b16 %v650
    %v851 = vunpack.c.h.b16 %v650
    %v852 = vunpack.c.l.b16 %v651
    %v853 = vunpack.c.h.b16 %v651
    %v854 = vunpack.c.l.b16 %v652
    %v855 = vunpack.c.h.b16 %v652
    %v856 = vunpack.c.l.b16 %v653
    %v857 = vunpack.c.h.b16 %v653
    %v858 = vunpack.c.l.b16 %v654
    %v859 = vunpack.c.h.b16 %v654
    %v860 = vunpack.c.l.b16 %v655
    %v861 = vunpack.c.h.b16 %v655
    %v862 = vunpack.c.l.b16 %v656
    %v863 = vunpack.c.h.b16 %v656
    %v864 = vunpack.c.l.b16 %v657
    %v865 = vunpack.c.h.b16 %v657
    %v866 = vunpack.c.l.b16 %v658
    %v867 = vunpack.c.h.b16 %v658
    %v868 = vunpack.c.l.b16 %v659
    %v869 = vunpack.c.h.b16 %v659
    %v870 = vunpack.c.l.b16 %v660
    %v871 = vunpack.c.h.b16 %v660
    %v872 = vunpack.c.l.b16 %v661
    %v873 = vunpack.c.h.b16 %v661
    %v874 = vunpack.c.l.b16 %v662
    %v875 = vunpack.c.h.b16 %v662
    %v876 = vunpack.c.l.b16 %v663
    %v877 = vunpack.c.h.b16 %v663
    %v878 = vpack.c.b16 %v754, %v750
    %v879 = vpack.c.b16 %v755, %v751
    %v880 = vpack.c.b16 %v756, %v752
    %v881 = vpack.c.b16 %v757, %v753
    %v882 = vpack.c.b16 %v762, %v758
    %v883 = vpack.c.b16 %v763, %v759
    %v884 = vpack.c.b16 %v764, %v760
    %v885 = vpack.c.b16 %v765, %v761
    %v886 = vpack.c.b16 %v770, %v766
    %v887 = vpack.c.b16 %v771, %v767
    %v888 = vpack.c.b16 %v772, %v768
    %v889 = vpack.c.b16 %v773, %v769
    %v890 = vpack.c.b16 %v778, %v774
    %v891 = vpack.c.b16 %v779, %v775
    %v892 = vpack.c.b16 %v780, %v776
    %v893 = vpack.c.b16 %v781, %v777
    %v894 = vpack.c.b16 %v786, %v782
    %v895 = vpack.c.b16 %v787, %v783
    %v896 = vpack.c.b16 %v788, %v784
    %v897 = vpack.c.b16 %v789, %v785
    %v898 = vpack.c.b16 %v794, %v790
    %v899 = vpack.c.b16 %v795, %v791
    %v900 = vpack.c.b16 %v796, %v792
    %v901 = vpack.c.b16 %v797, %v793
    %v902 = vpack.c.b16 %v802, %v798
    %v903 = vpack.c.b16 %v803, %v799
    %v904 = vpack.c.b16 %v804, %v800
    %v905 = vpack.c.b16 %v805, %v801
    %v906 = vpack.c.b16 %v810, %v806
    %v907 = vpack.c.b16 %v811, %v807
    %v908 = vpack.c.b16 %v812, %v808
    %v909 = vpack.c.b16 %v813, %v809
    %v910 = vpack.c.b16 %v818, %v814
    %v911 = vpack.c.b16 %v819, %v815
    %v912 = vpack.c.b16 %v820, %v816
    %v913 = vpack.c.b16 %v821, %v817
    %v914 = vpack.c.b16 %v826, %v822
    %v915 = vpack.c.b16 %v827, %v823
    %v916 = vpack.c.b16 %v828, %v824
    %v917 = vpack.c.b16 %v829, %v825
    %v918 = vpack.c.b16 %v834, %v830
    %v919 = vpack.c.b16 %v835, %v831
    %v920 = vpack.c.b16 %v836, %v832
    %v921 = vpack.c.b16 %v837, %v833
    %v922 = vpack.c.b16 %v842, %v838
    %v923 = vpack.c.b16 %v843, %v839
    %v924 = vpack.c.b16 %v844, %v840
    %v925 = vpack.c.b16 %v845, %v841
    %v926 = vpack.c.b16 %v850, %v846
    %v927 = vpack.c.b16 %v851, %v847
    %v928 = vpack.c.b16 %v852, %v848
    %v929 = vpack.c.b16 %v853, %v849
    %v930 = vpack.c.b16 %v858, %v854
    %v931 = vpack.c.b16 %v859, %v855
    %v932 = vpack.c.b16 %v860, %v856
    %v933 = vpack.c.b16 %v861, %v857
    %v934 = vpack.c.b16 %v866, %v862
    %v935 = vpack.c.b16 %v867, %v863
    %v936 = vpack.c.b16 %v868, %v864
    %v937 = vpack.c.b16 %v869, %v865
    %v938 = vpack.c.b16 %v874, %v870
    %v939 = vpack.c.b16 %v875, %v871
    %v940 = vpack.c.b16 %v876, %v872
    %v941 = vpack.c.b16 %v877, %v873
    %1006 = vmatprep.subr.bf16.mxu0 %v879
    %1007 = vmatpush1.bf16.msra.mxu0 %v878
    %1008 = vmatprep.subr.bf16.mxu0 %v883
    %1009 = vmatpush1.bf16.msra.mxu0 %v882
    %1010 = vmatprep.subr.bf16.mxu0 %v887
    %1011 = vmatpush1.bf16.msra.mxu0 %v886
    %1012 = vmatprep.subr.bf16.mxu0 %v891
    %1013 = vmatpush1.bf16.msra.mxu0 %v890
    %1014 = vmatprep.subr.bf16.mxu0 %v895
    %1015 = vmatpush1.bf16.msra.mxu0 %v894
    %1016 = vmatprep.subr.bf16.mxu0 %v899
    %1017 = vmatpush1.bf16.msra.mxu0 %v898
    %1018 = vmatprep.subr.bf16.mxu0 %v903
    %1019 = vmatpush1.bf16.msra.mxu0 %v902
    %1020 = vmatprep.subr.bf16.mxu0 %v907
    %1021 = vmatpush1.bf16.msra.mxu0 %v906
    %1022 = vmatprep.subr.bf16.mxu0 %v911
    %1023 = vmatpush1.bf16.msra.mxu0 %v910
    %1024 = vmatprep.subr.bf16.mxu0 %v915
    %1025 = vmatpush1.bf16.msra.mxu0 %v914
    %1026 = vmatprep.subr.bf16.mxu0 %v919
    %1027 = vmatpush1.bf16.msra.mxu0 %v918
    %1028 = vmatprep.subr.bf16.mxu0 %v923
    %1029 = vmatpush1.bf16.msra.mxu0 %v922
    %1030 = vmatprep.subr.bf16.mxu0 %v927
    %1031 = vmatpush1.bf16.msra.mxu0 %v926
    %1032 = vmatprep.subr.bf16.mxu0 %v931
    %1033 = vmatpush1.bf16.msra.mxu0 %v930
    %1034 = vmatprep.subr.bf16.mxu0 %v935
    %1035 = vmatpush1.bf16.msra.mxu0 %v934
    %1036 = vmatprep.subr.bf16.mxu0 %v939
    %1037 = vmatpush1.bf16.msra.mxu0 %v938
    %1038 = vmatprep.mubr.bf16.mxu0 %v597
    %1039 = vmatmul.mubr.bf16.gmra.mrb[0].mxu0 %v596
    %v1040 = vpop.f32.mrb[0].mxu0
    %v1041 = vadd.f32 %v669, %v1040
    %v1042 = vpop.f32.mrb[0].mxu0
    %v1043 = vadd.f32 %v673, %v1042
    %v1044 = vpop.f32.mrb[0].mxu0
    %v1045 = vadd.f32 %v669, %v1044
    %v1046 = vpop.f32.mrb[0].mxu0
    %v1047 = vadd.f32 %v673, %v1046
    %1048 = vmatprep.mubr.bf16.mxu0 %v599
    %1049 = vmatmul.mubr.bf16.gmra.mrb[0].mxu0 %v598
    %v1050 = vpop.f32.mrb[0].mxu0
    %v1051 = vadd.f32 %v669, %v1050
    %v1052 = vpop.f32.mrb[0].mxu0
    %v1053 = vadd.f32 %v673, %v1052
    %v1054 = vpop.f32.mrb[0].mxu0
    %v1055 = vadd.f32 %v669, %v1054
    %v1056 = vpop.f32.mrb[0].mxu0
    %v1057 = vadd.f32 %v673, %v1056
    %1058 = vdwg.mxu0
    %1059 = vmatprep.subr.bf16.mxu0 %v881
    %1060 = vmatpush1.bf16.msra.mxu0 %v880
    %1061 = vmatprep.subr.bf16.mxu0 %v885
    %1062 = vmatpush1.bf16.msra.mxu0 %v884
    %1063 = vmatprep.subr.bf16.mxu0 %v889
    %1064 = vmatpush1.bf16.msra.mxu0 %v888
    %1065 = vmatprep.subr.bf16.mxu0 %v893
    %1066 = vmatpush1.bf16.msra.mxu0 %v892
    %1067 = vmatprep.subr.bf16.mxu0 %v897
    %1068 = vmatpush1.bf16.msra.mxu0 %v896
    %1069 = vmatprep.subr.bf16.mxu0 %v901
    %1070 = vmatpush1.bf16.msra.mxu0 %v900
    %1071 = vmatprep.subr.bf16.mxu0 %v905
    %1072 = vmatpush1.bf16.msra.mxu0 %v904
    %1073 = vmatprep.subr.bf16.mxu0 %v909
    %1074 = vmatpush1.bf16.msra.mxu0 %v908
    %1075 = vmatprep.subr.bf16.mxu0 %v913
    %1076 = vmatpush1.bf16.msra.mxu0 %v912
    %1077 = vmatprep.subr.bf16.mxu0 %v917
    %1078 = vmatpush1.bf16.msra.mxu0 %v916
    %1079 = vmatprep.subr.bf16.mxu0 %v921
    %1080 = vmatpush1.bf16.msra.mxu0 %v920
    %1081 = vmatprep.subr.bf16.mxu0 %v925
    %1082 = vmatpush1.bf16.msra.mxu0 %v924
    %1083 = vmatprep.subr.bf16.mxu0 %v929
    %1084 = vmatpush1.bf16.msra.mxu0 %v928
    %1085 = vmatprep.subr.bf16.mxu0 %v933
    %1086 = vmatpush1.bf16.msra.mxu0 %v932
    %1087 = vmatprep.subr.bf16.mxu0 %v937
    %1088 = vmatpush1.bf16.msra.mxu0 %v936
    %1089 = vmatprep.subr.bf16.mxu0 %v941
    %1090 = vmatpush1.bf16.msra.mxu0 %v940
    %1091 = vmatprep.mubr.bf16.mxu0 %v597
    %1092 = vmatmul.mubr.bf16.gmra.mrb[0].mxu0 %v596
    %v1093 = vpop.f32.mrb[0].mxu0
    %v1094 = vadd.f32 %v677, %v1093
    %v1095 = vpop.f32.mrb[0].mxu0
    %v1096 = vadd.f32 %v681, %v1095
    %v1097 = vpop.f32.mrb[0].mxu0
    %v1098 = vadd.f32 %v677, %v1097
    %v1099 = vpop.f32.mrb[0].mxu0
    %v1100 = vadd.f32 %v681, %v1099
    %1101 = vmatprep.mubr.bf16.mxu0 %v599
    %1102 = vmatmul.mubr.bf16.gmra.mrb[0].mxu0 %v598
    %v1103 = vpop.f32.mrb[0].mxu0
    %v1104 = vadd.f32 %v677, %v1103
    %v1105 = vpop.f32.mrb[0].mxu0
    %v1106 = vadd.f32 %v681, %v1105
    %v1107 = vpop.f32.mrb[0].mxu0
    %v1108 = vadd.f32 %v677, %v1107
    %v1109 = vpop.f32.mrb[0].mxu0
    %v1110 = vadd.f32 %v681, %v1109
    %1111 = vdwg.mxu0
    %1112 = vst [vmem:[#allocation8] sm:$0xff] %v1041
    %1113 = vst [vmem:[#allocation8 + $0x8] sm:$0xff] %v1043
    %1114 = vst [vmem:[#allocation8 + $0x10] sm:$0xff] %v1094
    %1115 = vst [vmem:[#allocation8 + $0x18] sm:$0xff] %v1096
    %1116 = vst [vmem:[#allocation8 + $0x20] sm:$0xff] %v1045
    %1117 = vst [vmem:[#allocation8 + $0x28] sm:$0xff] %v1047
    %1118 = vst [vmem:[#allocation8 + $0x30] sm:$0xff] %v1098
    %1119 = vst [vmem:[#allocation8 + $0x38] sm:$0xff] %v1100
    %1120 = vst [vmem:[#allocation8 + $0x40] sm:$0xff] %v1051
    %1121 = vst [vmem:[#allocation8 + $0x48] sm:$0xff] %v1053
    %1122 = vst [vmem:[#allocation8 + $0x50] sm:$0xff] %v1104
    %1123 = vst [vmem:[#allocation8 + $0x58] sm:$0xff] %v1106
    %1124 = vst [vmem:[#allocation8 + $0x60] sm:$0xff] %v1055
    %1125 = vst [vmem:[#allocation8 + $0x68] sm:$0xff] %v1057
    %1126 = vst [vmem:[#allocation8 + $0x70] sm:$0xff] %v1108
    %1127 = vst [vmem:[#allocation8 + $0x78] sm:$0xff] %v1110
    // Predicated region
    $region34: #{tpu_custom_call.1} parent=1 // pred_check
      _
    $region35: #{tpu_custom_call.1} parent=1 // pred_check_branch
      %1129 = sbr.rel (0) target = $region37
    $region36: #{tpu_custom_call.1} parent=1 // pred_region
      %s1131 = ssub.s32 2048, 2048
      %1132 = vsyncadd [#allocation4], %s1131
      %s1133 = sshll.u32 [#allocation8], 4
      %s1134 = int_to_ptr.vmem [resolvable:$true] %s1133
      %1139 = dma.vmem_to_hbm [thread:$0]  %s1134, 2048, %s5, [#allocation4], 512, 512, 32
    $region37: #{tpu_custom_call.1} parent=1 // pred_fallthru
      _
    // Predicated region
    $region38: #{tpu_custom_call.1} parent=1 // pred_check
      _
    $region39: #{tpu_custom_call.1} parent=1 // pred_check_branch
      %1141 = sbr.rel (0) target = $region41
    $region40: #{tpu_custom_call.1} parent=1 // pred_region
      %1142 = dma.done [#allocation4], 2048
    $region41: #{tpu_custom_call.1} parent=1 // pred_fallthru
      _
    %1143 = vsyncpa [#allocation3], 1
    %1144 = vsyncpa [#allocation6], 1
    %1145 = vsyncpa [#allocation4], 1

</llo_original>
